<compile_context>
chip_gen: v7x
topology: tpu7x:2x2x1
jax: 0.10.0
libtpu: 0.0.40
codegen_flags: <defaults>
</compile_context>

<pallas_src>
import functools

import jax
import jax.numpy as jnp
import numpy as np
from jax.experimental import pallas as pl
from jax.experimental.pallas import tpu as pltpu


def _round_up(x: int, m: int) -> int:
    return ((x + m - 1) // m) * m


@functools.lru_cache(maxsize=None)
def _dft_cos_sin_packed(n: int, m: int, n_pad: int, w: int):
    """Packed, pre-scaled [cos | sin] DFT matrix of shape (n_pad, w).

    cos occupies lanes [0:m], sin occupies lanes [w//2 : w//2 + m]; all other
    entries (including rows >= n) are zero, so zero-padded signals and padded
    frequency bins contribute nothing.  The 2/n output scale is folded in.
    """
    half = w // 2
    nn = np.arange(n, dtype=np.float64)[:, None]
    kk = np.arange(m, dtype=np.float64)[None, :]
    ang = (2.0 * np.pi / n) * nn * kk
    scale = 2.0 / n
    cs = np.zeros((n_pad, w), dtype=np.float32)
    cs[:n, :m] = scale * np.cos(ang)
    cs[:n, half:half + m] = scale * np.sin(ang)
    return jnp.asarray(cs)


def _pick_tb(b: int) -> int:
    """Batch tile: big (amortize cs streaming / step overhead), but keep >= 2
    batch blocks when possible so v7x's two TensorCores both get work."""
    b_r = _round_up(b, 8)
    for cand in (512, 256, 128):
        if b_r >= 2 * cand:
            return cand
    if b_r >= 16:
        return _round_up(b_r // 2, 8)
    return b_r


def _pick_tn(n_pad: int) -> int:
    for cand in (2048, 1024, 512, 256, 128):
        if n_pad % cand == 0:
            return cand
    return 128  # unreachable: n_pad is a multiple of 128


def _vmem_estimate(tb, tn, n_pad, w, s_pad, cs_resident):
    """Rough double-buffered VMEM footprint in bytes (f32 everywhere)."""
    half = w // 2
    cs = 2 * n_pad * w * 4 if cs_resident else 2 * tn * w * 4
    return (2 * tb * tn * 4        # Y blocks (double-buffered)
            + cs                   # [cos|sin]
            + 2 * half * s_pad * 4  # spectra^T
            + 2 * 8 * s_pad * 4     # ||spec||^2 (sublane-padded)
            + 2 * tb * s_pad * 4    # d2 output blocks
            + tb * w * 4)           # f32 accumulator scratch


def _consonance_kernel(y_ref, cs_ref, specT_ref, spec_sq_ref, d2_ref, acc_ref,
                       *, half_w, tn, cs_resident):
    # y_ref:      (TB, TN)         block of input signals
    # cs_ref:     (N_pad, W) if resident else (TN, W)   packed [cos|sin]
    # specT_ref:  (W/2, S_pad)     model spectra, pre-transposed
    # spec_sq_ref:(1, S_pad)       precomputed ||spectrum_s||^2
    # d2_ref:     (TB, S_pad)      output squared distances
    # acc_ref:    (TB, W)          f32 accumulator for [re | im]
    n_idx = pl.program_id(1)

    @pl.when(n_idx == 0)
    def _():
        acc_ref[...] = jnp.zeros_like(acc_ref)

    if cs_resident:
        # cs lives fully in VMEM (DMA'd from HBM once); slice this step's
        # contraction chunk.  Start is statically a multiple of TN.
        start = pl.multiple_of(n_idx * tn, tn)
        cs_blk = cs_ref[pl.ds(start, tn), :]
    else:
        cs_blk = cs_ref[...]

    # Fused DFT: one MXU matmul produces re (first W/2 lanes) and im (last).
    acc_ref[...] += jnp.dot(y_ref[...], cs_blk,
                            preferred_element_type=jnp.float32)

    @pl.when(n_idx == pl.num_programs(1) - 1)
    def _():
        reim = acc_ref[...]
        re = reim[:, :half_w]
        im = reim[:, half_w:]
        pow_ = re * re + im * im                        # (TB, W/2); 2/N folded in cs
        mag = jnp.sqrt(pow_)                            # (2/N)*|FFT(y)[:M]|
        mag_sq = jnp.sum(pow_, axis=-1, keepdims=True)  # (TB, 1)
        cross = jnp.dot(mag, specT_ref[...],
                        preferred_element_type=jnp.float32)   # (TB, S_pad)
        d2_ref[...] = jnp.maximum(
            mag_sq + spec_sq_ref[...] - 2.0 * cross, 0.0)


def consonance_forward(Y, model_spectra, dissonance_vals, similarity_eps=0.5):
    """util_type == 'inverse_l2_nn'.  Returns (B, 1) float32.

    similarity_eps does not affect the nearest-neighbor selection (strictly
    monotone transform), so it is not needed inside the kernel.
    """
    del similarity_eps
    Y = jnp.asarray(Y, jnp.float32)
    model_spectra = jnp.asarray(model_spectra, jnp.float32)
    dissonance_vals = jnp.asarray(dissonance_vals, jnp.float32)

    B, N = Y.shape
    S, M = model_spectra.shape

    # Packed fused width: cos|sin share round_up(2*M, 128) lanes.
    W = _round_up(2 * M, 128)
    half = W // 2
    S_pad = _round_up(S, 128)
    N_pad = _round_up(N, 128)

    TB = _pick_tb(B)
    B_pad = _round_up(B, TB)
    TN = _pick_tn(N_pad)

    # Keep cs VMEM-resident (single HBM read) when it comfortably fits even
    # double-buffered; stay within a ~40 MiB budget so v7x (64 MiB VMEM) works.
    budget = 40 * 1024 * 1024
    cs_resident = (2 * N_pad * W * 4) <= 24 * 1024 * 1024
    while _vmem_estimate(TB, TN, N_pad, W, S_pad, cs_resident) > budget:
        if cs_resident:
            cs_resident = False
        elif TN > 128:
            TN //= 2
        elif TB > 8:
            TB = max(8, _round_up(TB // 2, 8))
            B_pad = _round_up(B, TB)
        else:
            break

    # Host-built, cached, pre-scaled DFT matrix.
    cs = _dft_cos_sin_packed(N, M, N_pad, W)           # (N_pad, W)

    # Skip the full-array pad copy of Y when it already tiles cleanly.
    if B_pad == B and N_pad == N:
        Y_in = Y
    else:
        Y_in = jnp.pad(Y, ((0, B_pad - B), (0, N_pad - N)))

    spec_pad = jnp.pad(model_spectra, ((0, S_pad - S), (0, half - M)))
    specT = spec_pad.T                                 # (W/2, S_pad)
    spec_sq = jnp.sum(spec_pad * spec_pad, axis=-1)[None, :]   # (1, S_pad)

    if cs_resident:
        cs_spec = pl.BlockSpec((N_pad, W), lambda b, n: (0, 0))
    else:
        cs_spec = pl.BlockSpec((TN, W), lambda b, n: (n, 0))

    grid = (B_pad // TB, N_pad // TN)
    grid_spec = pltpu.PrefetchScalarGridSpec(
        num_scalar_prefetch=0,
        grid=grid,
        in_specs=[
            pl.BlockSpec((TB, TN), lambda b, n: (b, n)),       # Y
            cs_spec,                                           # packed [cos|sin]
            pl.BlockSpec((half, S_pad), lambda b, n: (0, 0)),  # spectra^T
            pl.BlockSpec((1, S_pad), lambda b, n: (0, 0)),     # ||spec||^2
        ],
        out_specs=pl.BlockSpec((TB, S_pad), lambda b, n: (b, 0)),
        scratch_shapes=[pltpu.VMEM((TB, W), jnp.float32)],
    )

    n_b_blocks = B_pad // TB
    cs_reads = 1 if cs_resident else n_b_blocks
    cost = pl.CostEstimate(
        flops=2 * B_pad * N_pad * W + 2 * B_pad * half * S_pad + 4 * B_pad * half,
        transcendentals=B_pad * half,
        bytes_accessed=4 * (B_pad * N_pad
                            + cs_reads * N_pad * W
                            + half * S_pad + S_pad
                            + B_pad * S_pad),
    )

    est = _vmem_estimate(TB, TN, N_pad, W, S_pad, cs_resident)
    vmem_limit = min(max(32 * 1024 * 1024, (est * 3) // 2), 48 * 1024 * 1024)

    d2 = pl.pallas_call(
        functools.partial(_consonance_kernel, half_w=half, tn=TN,
                          cs_resident=cs_resident),
        out_shape=jax.ShapeDtypeStruct((B_pad, S_pad), jnp.float32),
        grid_spec=grid_spec,
        compiler_params=pltpu.CompilerParams(
            dimension_semantics=("parallel", "arbitrary"),
            vmem_limit_bytes=vmem_limit,
        ),
        cost_estimate=cost,
    )(Y_in, cs, specT, spec_sq)

    # Nearest-neighbor selection (tiny, plain-JAX glue).  argmin over squared
    # distance == argmax over 1/(sqrt(d2)+eps); slice away B/S padding BEFORE
    # the argmin (padded columns hold mag_sq, not +inf).
    ind = jnp.argmin(d2[:B, :S], axis=-1)
    res = -jnp.log(dissonance_vals)[ind]
    return res[:, None]


def _reference(Y, model_spectra, dissonance_vals, eps):
    Y = np.asarray(Y, np.float64)
    spectra = np.asarray(model_spectra, np.float64)
    diss = np.asarray(dissonance_vals, np.float64)
    out = []
    for y in Y:
        yf = np.fft.fft(y)
        yf = 2.0 / len(y) * np.abs(yf[: spectra.shape[1]])
        sims = [1.0 / (np.linalg.norm(yf - s) + eps) for s in spectra]
        ind = int(np.argmax(sims))
        out.append(-np.log(diss[ind]))
    return np.array(out)[:, None]


if __name__ == "__main__":
    key = jax.random.PRNGKey(0)
    k_y, k_spec = jax.random.split(key)

    B, N = 8, 128        # batch of signals, signal length
    S, M = 6, 16         # number of model spectra, spectrum length

    Y = jax.random.normal(k_y, (B, N), dtype=jnp.float32)
    # Deterministic synthetic "model spectra" (non-negative, like magnitudes).
    model_spectra = jnp.abs(jax.random.normal(k_spec, (S, M), dtype=jnp.float32))
    # Deterministic dissonance values in (0, 1).
    dissonance_vals = jnp.linspace(0.1, 0.9, S, dtype=jnp.float32)

    out = consonance_forward(Y, model_spectra, dissonance_vals, similarity_eps=0.5)
    out = jax.block_until_ready(out)

    ref = _reference(Y, model_spectra, dissonance_vals, eps=0.5)
    assert out.shape == (B, 1), out.shape
    np.testing.assert_allclose(np.asarray(out), ref, rtol=1e-4, atol=1e-5)

    print("KERNEL_OK")
</pallas_src>

<mosaic_0001>
module attributes {stable_mosaic.version = 11 : i64} {
  func.func @_consonance_kernel(%arg0: i32, %arg1: i32, %arg2: memref<8x128xf32, #tpu.memory_space<vmem>>, %arg3: memref<128x128xf32, #tpu.memory_space<vmem>>, %arg4: memref<64x128xf32, #tpu.memory_space<vmem>>, %arg5: memref<1x128xf32, #tpu.memory_space<vmem>>, %arg6: memref<8x128xf32, #tpu.memory_space<vmem>>, %arg7: memref<8x128xf32, #tpu.memory_space<vmem>>) attributes {dimension_semantics = [#tpu.dimension_semantics<parallel>, #tpu.dimension_semantics<arbitrary>], iteration_bounds = array<i64: 1, 1>, scalar_prefetch = 0 : i64, scratch_operands = 1 : i64, tpu.core_type = #tpu.core_type<tc>, window_params = [{transform_indices = @transform_0, window_bounds = array<i64: 8, 128>}, {pipeline_mode = #tpu.pipeline_mode<synchronous>, transform_indices = @transform_1, window_bounds = array<i64: 128, 128>}, {pipeline_mode = #tpu.pipeline_mode<synchronous>, transform_indices = @transform_2, window_bounds = array<i64: 64, 128>}, {pipeline_mode = #tpu.pipeline_mode<synchronous>, transform_indices = @transform_3, window_bounds = array<i64: 1, 128>}, {transform_indices = @transform_4, window_bounds = array<i64: 8, 128>}]} {
    %c0_i32 = arith.constant 0 : i32
    %0 = arith.cmpi eq, %arg1, %c0_i32 : i32
    %1 = arith.extui %0 : i1 to i32
    %c0_i32_0 = arith.constant 0 : i32
    %2 = arith.cmpi ne, %1, %c0_i32_0 : i32
    scf.if %2 {
      %cst_9 = arith.constant 0.000000e+00 : f32
      %15 = vector.broadcast %cst_9 : f32 to vector<8x128xf32>
      %c0_10 = arith.constant 0 : index
      %c0_11 = arith.constant 0 : index
      %16 = vector.load %arg7[%c0_10, %c0_11] : memref<8x128xf32, #tpu.memory_space<vmem>>, vector<8x128xf32>
      tpu.vector_store %arg7[%c0_10, %c0_11], %15 {strides = array<i32>} : memref<8x128xf32, #tpu.memory_space<vmem>>, vector<8x128xf32>,
    } else {
    }
    %c128_i32 = arith.constant 128 : i32
    %3 = arith.muli %arg1, %c128_i32 : i32
    %4 = tpu.assume_multiple %3, 128 : i32
    %5 = arith.index_cast %4 : i32 to index
    %c0 = arith.constant 0 : index
    %6 = vector.load %arg3[%5, %c0] : memref<128x128xf32, #tpu.memory_space<vmem>>, vector<128x128xf32>
    %c0_1 = arith.constant 0 : index
    %c0_2 = arith.constant 0 : index
    %7 = vector.load %arg7[%c0_1, %c0_2] : memref<8x128xf32, #tpu.memory_space<vmem>>, vector<8x128xf32>
    %c0_3 = arith.constant 0 : index
    %c0_4 = arith.constant 0 : index
    %8 = vector.load %arg2[%c0_3, %c0_4] : memref<8x128xf32, #tpu.memory_space<vmem>>, vector<8x128xf32>
    %cst = arith.constant dense<0.000000e+00> : vector<8x128xf32>
    %9 = tpu.matmul %8, %6, %cst {dimension_numbers = #tpu.dot_dimension_numbers<[1], [0], [0], [1], [0, 0, 1, 1], [], []>} : vector<8x128xf32>, vector<128x128xf32>, vector<8x128xf32> -> vector<8x128xf32>
    %10 = arith.addf %7, %9 : vector<8x128xf32>
    %c0_5 = arith.constant 0 : index
    %c0_6 = arith.constant 0 : index
    %11 = vector.load %arg7[%c0_5, %c0_6] : memref<8x128xf32, #tpu.memory_space<vmem>>, vector<8x128xf32>
    tpu.vector_store %arg7[%c0_5, %c0_6], %10 {strides = array<i32>} : memref<8x128xf32, #tpu.memory_space<vmem>>, vector<8x128xf32>,
    %c0_i32_7 = arith.constant 0 : i32
    %12 = arith.cmpi eq, %arg1, %c0_i32_7 : i32
    %13 = arith.extui %12 : i1 to i32
    %c0_i32_8 = arith.constant 0 : i32
    %14 = arith.cmpi ne, %13, %c0_i32_8 : i32
    scf.if %14 {
      %c0_9 = arith.constant 0 : index
      %c0_10 = arith.constant 0 : index
      %15 = vector.load %arg7[%c0_9, %c0_10] : memref<8x128xf32, #tpu.memory_space<vmem>>, vector<8x128xf32>
      %16 = vector.extract_strided_slice %15 {offsets = [0, 0], sizes = [8, 64], strides = [1, 1]} : vector<8x128xf32> to vector<8x64xf32>
      %17 = vector.extract_strided_slice %15 {offsets = [0, 64], sizes = [8, 64], strides = [1, 1]} : vector<8x128xf32> to vector<8x64xf32>
      %18 = arith.mulf %16, %16 : vector<8x64xf32>
      %19 = arith.mulf %17, %17 : vector<8x64xf32>
      %20 = arith.addf %18, %19 : vector<8x64xf32>
      %21 = math.sqrt %20 : vector<8x64xf32>
      %cst_11 = arith.constant dense<0.000000e+00> : vector<8xf32>
      %22 = vector.multi_reduction <add>, %20, %cst_11 [1] : vector<8x64xf32> to vector<8xf32>
      %23 = vector.shape_cast %22 : vector<8xf32> to vector<8x1xf32>
      %c0_12 = arith.constant 0 : index
      %c0_13 = arith.constant 0 : index
      %24 = vector.load %arg4[%c0_12, %c0_13] : memref<64x128xf32, #tpu.memory_space<vmem>>, vector<64x128xf32>
      %cst_14 = arith.constant dense<0.000000e+00> : vector<8x128xf32>
      %25 = tpu.matmul %21, %24, %cst_14 {dimension_numbers = #tpu.dot_dimension_numbers<[1], [0], [0], [1], [0, 0, 1, 1], [], []>} : vector<8x64xf32>, vector<64x128xf32>, vector<8x128xf32> -> vector<8x128xf32>
      %c0_15 = arith.constant 0 : index
      %c0_16 = arith.constant 0 : index
      %26 = vector.load %arg5[%c0_15, %c0_16] : memref<1x128xf32, #tpu.memory_space<vmem>>, vector<1x128xf32>
      %27 = vector.broadcast %23 : vector<8x1xf32> to vector<8x128xf32>
      %28 = vector.broadcast %26 : vector<1x128xf32> to vector<8x128xf32>
      %29 = arith.addf %27, %28 : vector<8x128xf32>
      %cst_17 = arith.constant 2.000000e+00 : f32
      %30 = vector.broadcast %cst_17 : f32 to vector<8x128xf32>
      %31 = arith.mulf %30, %25 : vector<8x128xf32>
      %32 = arith.subf %29, %31 : vector<8x128xf32>
      %cst_18 = arith.constant 0.000000e+00 : f32
      %33 = vector.broadcast %cst_18 : f32 to vector<8x128xf32>
      %34 = arith.maximumf %32, %33 : vector<8x128xf32>
      %c0_19 = arith.constant 0 : index
      %c0_20 = arith.constant 0 : index
      %35 = vector.load %arg6[%c0_19, %c0_20] : memref<8x128xf32, #tpu.memory_space<vmem>>, vector<8x128xf32>
      tpu.vector_store %arg6[%c0_19, %c0_20], %34 {strides = array<i32>} : memref<8x128xf32, #tpu.memory_space<vmem>>, vector<8x128xf32>,
    } else {
    }
    return
  }
  func.func @transform_0(%arg0: i32, %arg1: i32) -> (i32, i32) {
    %c0_i32 = arith.constant 0 : i32
    return %arg0, %arg1 : i32, i32
  }
  func.func @transform_1(%arg0: i32, %arg1: i32) -> (i32, i32) {
    %c0_i32 = arith.constant 0 : i32
    %c0_i32_0 = arith.constant 0 : i32
    %c0_i32_1 = arith.constant 0 : i32
    return %c0_i32, %c0_i32_0 : i32, i32
  }
  func.func @transform_2(%arg0: i32, %arg1: i32) -> (i32, i32) {
    %c0_i32 = arith.constant 0 : i32
    %c0_i32_0 = arith.constant 0 : i32
    %c0_i32_1 = arith.constant 0 : i32
    return %c0_i32, %c0_i32_0 : i32, i32
  }
  func.func @transform_3(%arg0: i32, %arg1: i32) -> (i32, i32) {
    %c0_i32 = arith.constant 0 : i32
    %c0_i32_0 = arith.constant 0 : i32
    %c0_i32_1 = arith.constant 0 : i32
    return %c0_i32, %c0_i32_0 : i32, i32
  }
  func.func @transform_4(%arg0: i32, %arg1: i32) -> (i32, i32) {
    %c0_i32 = arith.constant 0 : i32
    %c0_i32_0 = arith.constant 0 : i32
    return %arg0, %c0_i32 : i32, i32
  }
}

</mosaic_0001>

<llo_original>
// kernel: tpu_custom_call.1
$region0: #{tpu_custom_call.1}
  #allocation0 [shape = 'u32[]', space=smem, size = 0x4, offset = 0x4, fixed_abs, tag = 'smem constant byte address 0x4 - core index']
  #allocation1 [shape = 'u32[144,128]{1,0:T(1,128)}', space=vmem, size = 0x12000, scoped, tag = 'internal scratch']
  #allocation2 [shape = 'f32[8,128]{1,0:T(8,128)}', space=vmem, size = 0x1000, scoped, tag = 'scratch operand']
  %s0 = inlined_call_operand.hbm [shape: f32[8,128], index: 0, kind: input, shape index: {}]
  %s1 = inlined_call_operand.hbm [shape: f32[128,128], index: 1, kind: input, shape index: {}]
  %s2 = inlined_call_operand.hbm [shape: f32[64,128], index: 2, kind: input, shape index: {}]
  %s3 = inlined_call_operand.vmem [shape: f32[1,128], index: 3, kind: input, shape index: {}]
  %s4 = inlined_call_operand.hbm [shape: f32[8,128], index: 4, kind: output, shape index: {}]
  %s5 = sld [smem:[#allocation0]]
  $region46: #{tpu_custom_call.1} parent=0
    _
  %s7 = ssub.s32 1, %s5
  %s8 = scalar_select 0, %s7, %s5
  $region1: #{tpu_custom_call.1} parent=0
    #allocation3 [shape = 'u8[4096]{0}', space=vmem, size = 0x1000, scoped, tag = 'input window, operand 0, single buffered']
    #allocation4 [shape = 's32[1]{0}', space=sflag, size = 0x4, scoped, tag = 'scoped memory for tpu_custom_call.1']
    #allocation5 [shape = 's32[1]{0}', space=sflag, size = 0x4, scoped, tag = 'scoped memory for tpu_custom_call.1']
    #allocation6 [shape = 'u8[65536]{0}', space=vmem, size = 0x10000, scoped, tag = 'input window, operand 1, single buffered']
    #allocation7 [shape = 's32[1]{0}', space=sflag, size = 0x4, scoped, tag = 'scoped memory for tpu_custom_call.1']
    #allocation8 [shape = 'u8[32768]{0}', space=vmem, size = 0x8000, scoped, tag = 'input window, operand 2, single buffered']
    #allocation9 [shape = 'u8[4096]{0}', space=vmem, size = 0x1000, scoped, tag = 'output window, operand 0, single buffered']
    %9 = vsyncpa [#allocation4], 0
    %10 = vsyncpa [#allocation7], 0
    %11 = vsyncpa [#allocation5], 0
    // Predicated region
    $region2: #{tpu_custom_call.1} parent=1 // pred_check
      _
    $region3: #{tpu_custom_call.1} parent=1 // pred_check_branch
      %13 = sbr.rel (0) target = $region5
    $region4: #{tpu_custom_call.1} parent=1 // pred_region
      %s15 = ssub.s32 128, 128
      %16 = vsyncadd [#allocation4], %s15
      %s18 = sshll.u32 [#allocation3], 4
      %s19 = int_to_ptr.vmem [resolvable:$true] %s18
      %21 = dma.hbm_to_vmem [thread:$0]  %s0, 128, %s19, [#allocation4]
    $region5: #{tpu_custom_call.1} parent=1 // pred_fallthru
      _
    // Predicated region
    $region6: #{tpu_custom_call.1} parent=1 // pred_check
      _
    $region7: #{tpu_custom_call.1} parent=1 // pred_check_branch
      %23 = sbr.rel (0) target = $region9
    $region8: #{tpu_custom_call.1} parent=1 // pred_region
      %s25 = ssub.s32 2048, 2048
      %26 = vsyncadd [#allocation7], %s25
      %s27 = sshll.u32 [#allocation6], 4
      %s28 = int_to_ptr.vmem [resolvable:$true] %s27
      %33 = dma.hbm_to_vmem [thread:$0]  %s1, 2048, %s28, [#allocation7], 128, 128, 8
    $region9: #{tpu_custom_call.1} parent=1 // pred_fallthru
      _
    // Predicated region
    $region10: #{tpu_custom_call.1} parent=1 // pred_check
      _
    $region11: #{tpu_custom_call.1} parent=1 // pred_check_branch
      %35 = sbr.rel (0) target = $region13
    $region12: #{tpu_custom_call.1} parent=1 // pred_region
      %s37 = ssub.s32 1024, 1024
      %38 = vsyncadd [#allocation7], %s37
      %s39 = sshll.u32 [#allocation8], 4
      %s40 = int_to_ptr.vmem [resolvable:$true] %s39
      %45 = dma.hbm_to_vmem [thread:$0]  %s2, 1024, %s40, [#allocation7], 128, 128, 8
    $region13: #{tpu_custom_call.1} parent=1 // pred_fallthru
      _
    // Predicated region
    $region14: #{tpu_custom_call.1} parent=1 // pred_check
      _
    $region15: #{tpu_custom_call.1} parent=1 // pred_check_branch
      %47 = sbr.rel (0) target = $region17
    $region16: #{tpu_custom_call.1} parent=1 // pred_region
      _
    $region17: #{tpu_custom_call.1} parent=1 // pred_fallthru
      _
    // Predicated region
    $region18: #{tpu_custom_call.1} parent=1 // pred_check
      _
    $region19: #{tpu_custom_call.1} parent=1 // pred_check_branch
      %49 = sbr.rel (0) target = $region21
    $region20: #{tpu_custom_call.1} parent=1 // pred_region
      %50 = dma.done [#allocation4], 128
    $region21: #{tpu_custom_call.1} parent=1 // pred_fallthru
      _
    // Predicated region
    $region22: #{tpu_custom_call.1} parent=1 // pred_check
      _
    $region23: #{tpu_custom_call.1} parent=1 // pred_check_branch
      %52 = sbr.rel (0) target = $region25
    $region24: #{tpu_custom_call.1} parent=1 // pred_region
      %53 = dma.done [#allocation7], 2048
    $region25: #{tpu_custom_call.1} parent=1 // pred_fallthru
      _
    // Predicated region
    $region26: #{tpu_custom_call.1} parent=1 // pred_check
      _
    $region27: #{tpu_custom_call.1} parent=1 // pred_check_branch
      %55 = sbr.rel (0) target = $region29
    $region28: #{tpu_custom_call.1} parent=1 // pred_region
      %56 = dma.done [#allocation7], 1024
    $region29: #{tpu_custom_call.1} parent=1 // pred_fallthru
      _
    %p57 = scmp.eq.s32.totalorder 0, 0
    // Predicated region
    $region30: #{tpu_custom_call.1} parent=1 // pred_check
      %p58 = pneg %p57
    $region31: #{tpu_custom_call.1} parent=1 // pred_check_branch
      %60 = sbr.rel (%p58) target = $region33
    $region32: #{tpu_custom_call.1} parent=1 // pred_region
      %61 = vst [vmem:[#allocation2] sm:$0xff] 0.0
    $region33: #{tpu_custom_call.1} parent=1 // pred_fallthru
      _
    %s62 = smul.u32 0, 128
    %s63 = scalar_lea.vmem [#allocation6], %s62
    %v64 = vld [vmem:[%s63] sm:$0xff]
    %v65 = vld [vmem:[%s63 + $0x8] sm:$0xff]
    %v66 = vld [vmem:[%s63 + $0x10] sm:$0xff]
    %v67 = vld [vmem:[%s63 + $0x18] sm:$0xff]
    %v68 = vld [vmem:[%s63 + $0x20] sm:$0xff]
    %v69 = vld [vmem:[%s63 + $0x28] sm:$0xff]
    %v70 = vld [vmem:[%s63 + $0x30] sm:$0xff]
    %v71 = vld [vmem:[%s63 + $0x38] sm:$0xff]
    %v72 = vld [vmem:[%s63 + $0x40] sm:$0xff]
    %v73 = vld [vmem:[%s63 + $0x48] sm:$0xff]
    %v74 = vld [vmem:[%s63 + $0x50] sm:$0xff]
    %v75 = vld [vmem:[%s63 + $0x58] sm:$0xff]
    %v76 = vld [vmem:[%s63 + $0x60] sm:$0xff]
    %v77 = vld [vmem:[%s63 + $0x68] sm:$0xff]
    %v78 = vld [vmem:[%s63 + $0x70] sm:$0xff]
    %v79 = vld [vmem:[%s63 + $0x78] sm:$0xff]
    %v80 = vld [vmem:[#allocation2] sm:$0xff]
    %v81 = vld [vmem:[#allocation3] sm:$0xff]
    %82 = vmatprep.subr.mxu0 0.0
    %83 = vmatpush1.msra.mxu0 %v64
    %84 = vmatprep.subr.mxu0 0.0
    %85 = vmatpush1.msra.mxu0 %v65
    %86 = vmatprep.subr.mxu0 0.0
    %87 = vmatpush1.msra.mxu0 %v66
    %88 = vmatprep.subr.mxu0 0.0
    %89 = vmatpush1.msra.mxu0 %v67
    %90 = vmatprep.subr.mxu0 0.0
    %91 = vmatpush1.msra.mxu0 %v68
    %92 = vmatprep.subr.mxu0 0.0
    %93 = vmatpush1.msra.mxu0 %v69
    %94 = vmatprep.subr.mxu0 0.0
    %95 = vmatpush1.msra.mxu0 %v70
    %96 = vmatprep.subr.mxu0 0.0
    %97 = vmatpush1.msra.mxu0 %v71
    %98 = vmatprep.subr.mxu0 0.0
    %99 = vmatpush1.msra.mxu0 %v72
    %100 = vmatprep.subr.mxu0 0.0
    %101 = vmatpush1.msra.mxu0 %v73
    %102 = vmatprep.subr.mxu0 0.0
    %103 = vmatpush1.msra.mxu0 %v74
    %104 = vmatprep.subr.mxu0 0.0
    %105 = vmatpush1.msra.mxu0 %v75
    %106 = vmatprep.subr.mxu0 0.0
    %107 = vmatpush1.msra.mxu0 %v76
    %108 = vmatprep.subr.mxu0 0.0
    %109 = vmatpush1.msra.mxu0 %v77
    %110 = vmatprep.subr.mxu0 0.0
    %111 = vmatpush1.msra.mxu0 %v78
    %112 = vmatprep.subr.mxu0 0.0
    %113 = vmatpush1.msra.mxu0 %v79
    %114 = vmatprep.subr.mxu0 0.0
    %115 = vmatpush1.msra.mxu0 0.0
    %116 = vmatprep.subr.mxu0 0.0
    %117 = vmatpush1.msra.mxu0 0.0
    %118 = vmatprep.subr.mxu0 0.0
    %119 = vmatpush1.msra.mxu0 0.0
    %120 = vmatprep.subr.mxu0 0.0
    %121 = vmatpush1.msra.mxu0 0.0
    %122 = vmatprep.subr.mxu0 0.0
    %123 = vmatpush1.msra.mxu0 0.0
    %124 = vmatprep.subr.mxu0 0.0
    %125 = vmatpush1.msra.mxu0 0.0
    %126 = vmatprep.subr.mxu0 0.0
    %127 = vmatpush1.msra.mxu0 0.0
    %128 = vmatprep.subr.mxu0 0.0
    %129 = vmatpush1.msra.mxu0 0.0
    %130 = vmatprep.subr.mxu0 0.0
    %131 = vmatpush1.msra.mxu0 0.0
    %132 = vmatprep.subr.mxu0 0.0
    %133 = vmatpush1.msra.mxu0 0.0
    %134 = vmatprep.subr.mxu0 0.0
    %135 = vmatpush1.msra.mxu0 0.0
    %136 = vmatprep.subr.mxu0 0.0
    %137 = vmatpush1.msra.mxu0 0.0
    %138 = vmatprep.subr.mxu0 0.0
    %139 = vmatpush1.msra.mxu0 0.0
    %140 = vmatprep.subr.mxu0 0.0
    %141 = vmatpush1.msra.mxu0 0.0
    %142 = vmatprep.subr.mxu0 0.0
    %143 = vmatpush1.msra.mxu0 0.0
    %144 = vmatprep.subr.mxu0 0.0
    %145 = vmatpush1.msra.mxu0 0.0
    %146 = vmatprep.mubr.f32.mxu0 0.0
    %147 = vmatmul.mubr.f32.gmra.mrb[0].mxu0 %v81
    %v148 = vpop.f32.mrb[0].mxu0
    %v149 = vadd.f32 0.0, %v148
    %v150 = vpop.f32.mrb[0].mxu0
    %151 = vdwg.mxu0
    %v152 = vadd.f32 %v80, %v149
    %153 = vst [vmem:[#allocation2] sm:$0xff] %v152
    // Predicated region
    $region34: #{tpu_custom_call.1} parent=1 // pred_check
      %p154 = pneg %p57
    $region35: #{tpu_custom_call.1} parent=1 // pred_check_branch
      %156 = sbr.rel (%p154) target = $region37
    $region36: #{tpu_custom_call.1} parent=1 // pred_region
      %v157 = vld [vmem:[#allocation2] sm:$0xff]
      %v158 = vmul.f32 %v157, %v157
      %160 = vrot.lane.b32.xlu0 %v158, 64
      %v161 = vpop.permute.xlu0 %160
      %v163 = vadd.f32 %v158, %v161
      %v164 = vrsqrt.pop %v163
      %v165 = vmul.f32 %v163, %v164
      %vm166 = vcmp.eq.f32.partialorder %v163, inf
      %v167 = vsel %vm166, %v163, %v165
      %vm168 = vcmp.eq.f32.partialorder %v163, 0.0
      %v169 = vand.u32 %v163, 2147483648
      %v170 = vsel %vm168, %v169, %v167
      %vm171 = vcmask 523264
      %v172 = vsel %vm171, %v163, 0.0
      %173 = vadd.xlane.f32.xlu0 %v172
      %v174 = vpop.xlane.xlu0 %173
      %v175 = vld [vmem:[#allocation8] sm:$0xff]
      %v176 = vld [vmem:[#allocation8 + $0x8] sm:$0xff]
      %v177 = vld [vmem:[#allocation8 + $0x10] sm:$0xff]
      %v178 = vld [vmem:[#allocation8 + $0x18] sm:$0xff]
      %v179 = vld [vmem:[#allocation8 + $0x20] sm:$0xff]
      %v180 = vld [vmem:[#allocation8 + $0x28] sm:$0xff]
      %v181 = vld [vmem:[#allocation8 + $0x30] sm:$0xff]
      %v182 = vld [vmem:[#allocation8 + $0x38] sm:$0xff]
      %v184 = vsel %vm171, %v170, 0
      %186 = vmatprep.subr.mxu0 0.0
      %187 = vmatpush1.msra.mxu0 %v175
      %188 = vmatprep.subr.mxu0 0.0
      %189 = vmatpush1.msra.mxu0 %v176
      %190 = vmatprep.subr.mxu0 0.0
      %191 = vmatpush1.msra.mxu0 %v177
      %192 = vmatprep.subr.mxu0 0.0
      %193 = vmatpush1.msra.mxu0 %v178
      %194 = vmatprep.subr.mxu0 0.0
      %195 = vmatpush1.msra.mxu0 %v179
      %196 = vmatprep.subr.mxu0 0.0
      %197 = vmatpush1.msra.mxu0 %v180
      %198 = vmatprep.subr.mxu0 0.0
      %199 = vmatpush1.msra.mxu0 %v181
      %200 = vmatprep.subr.mxu0 0.0
      %201 = vmatpush1.msra.mxu0 %v182
      %202 = vmatprep.subr.mxu0 0.0
      %203 = vmatpush1.msra.mxu0 0.0
      %204 = vmatprep.subr.mxu0 0.0
      %205 = vmatpush1.msra.mxu0 0.0
      %206 = vmatprep.subr.mxu0 0.0
      %207 = vmatpush1.msra.mxu0 0.0
      %208 = vmatprep.subr.mxu0 0.0
      %209 = vmatpush1.msra.mxu0 0.0
      %210 = vmatprep.subr.mxu0 0.0
      %211 = vmatpush1.msra.mxu0 0.0
      %212 = vmatprep.subr.mxu0 0.0
      %213 = vmatpush1.msra.mxu0 0.0
      %214 = vmatprep.subr.mxu0 0.0
      %215 = vmatpush1.msra.mxu0 0.0
      %216 = vmatprep.subr.mxu0 0.0
      %217 = vmatpush1.msra.mxu0 0.0
      %218 = vmatprep.subr.mxu0 0.0
      %219 = vmatpush1.msra.mxu0 0.0
      %220 = vmatprep.subr.mxu0 0.0
      %221 = vmatpush1.msra.mxu0 0.0
      %222 = vmatprep.subr.mxu0 0.0
      %223 = vmatpush1.msra.mxu0 0.0
      %224 = vmatprep.subr.mxu0 0.0
      %225 = vmatpush1.msra.mxu0 0.0
      %226 = vmatprep.subr.mxu0 0.0
      %227 = vmatpush1.msra.mxu0 0.0
      %228 = vmatprep.subr.mxu0 0.0
      %229 = vmatpush1.msra.mxu0 0.0
      %230 = vmatprep.subr.mxu0 0.0
      %231 = vmatpush1.msra.mxu0 0.0
      %232 = vmatprep.subr.mxu0 0.0
      %233 = vmatpush1.msra.mxu0 0.0
      %234 = vmatprep.subr.mxu0 0.0
      %235 = vmatpush1.msra.mxu0 0.0
      %236 = vmatprep.subr.mxu0 0.0
      %237 = vmatpush1.msra.mxu0 0.0
      %238 = vmatprep.subr.mxu0 0.0
      %239 = vmatpush1.msra.mxu0 0.0
      %240 = vmatprep.subr.mxu0 0.0
      %241 = vmatpush1.msra.mxu0 0.0
      %242 = vmatprep.subr.mxu0 0.0
      %243 = vmatpush1.msra.mxu0 0.0
      %244 = vmatprep.subr.mxu0 0.0
      %245 = vmatpush1.msra.mxu0 0.0
      %246 = vmatprep.subr.mxu0 0.0
      %247 = vmatpush1.msra.mxu0 0.0
      %248 = vmatprep.subr.mxu0 0.0
      %249 = vmatpush1.msra.mxu0 0.0
      %250 = vmatprep.mubr.f32.mxu0 0.0
      %251 = vmatmul.mubr.f32.gmra.mrb[0].mxu0 %v184
      %v252 = vpop.f32.mrb[0].mxu0
      %v253 = vadd.f32 0.0, %v252
      %v254 = vpop.f32.mrb[0].mxu0
      %255 = vdwg.mxu0
      %v256 = vld [vmem:[%s3] sm:$0x1]
      %v258 = vlaneseq
      %v259 = vshrl.u32 %v258, 7
      %v260 = vsub.s32 0, %v259
      %v261 = vrot.slane %v256, %v260
      %v263 = vadd.f32 %v174, %v261
      %v264 = vmul.f32 %v253, 2.0
      %v265 = vsub.f32 %v263, %v264
      %v266 = vmax.f32 %v265, 0.0
      %267 = vst [vmem:[#allocation9] sm:$0xff] %v266
    $region37: #{tpu_custom_call.1} parent=1 // pred_fallthru
      _
    // Predicated region
    $region38: #{tpu_custom_call.1} parent=1 // pred_check
      _
    $region39: #{tpu_custom_call.1} parent=1 // pred_check_branch
      %269 = sbr.rel (0) target = $region41
    $region40: #{tpu_custom_call.1} parent=1 // pred_region
      %s271 = ssub.s32 128, 128
      %272 = vsyncadd [#allocation5], %s271
      %s274 = sshll.u32 [#allocation9], 4
      %s275 = int_to_ptr.vmem [resolvable:$true] %s274
      %277 = dma.vmem_to_hbm [thread:$0]  %s275, 128, %s4, [#allocation5]
    $region41: #{tpu_custom_call.1} parent=1 // pred_fallthru
      _
    // Predicated region
    $region42: #{tpu_custom_call.1} parent=1 // pred_check
      _
    $region43: #{tpu_custom_call.1} parent=1 // pred_check_branch
      %279 = sbr.rel (0) target = $region45
    $region44: #{tpu_custom_call.1} parent=1 // pred_region
      %280 = dma.done [#allocation5], 128
    $region45: #{tpu_custom_call.1} parent=1 // pred_fallthru
      _
    %281 = vsyncpa [#allocation4], 1
    %282 = vsyncpa [#allocation7], 1
    %283 = vsyncpa [#allocation5], 1

</llo_original>
